<compile_context>
chip_gen: v7x
topology: tpu7x:2x2x1
jax: 0.10.0
libtpu: 0.0.40
codegen_flags: <defaults>
</compile_context>

<pallas_src>
import functools

import jax
import jax.numpy as jnp
from jax.experimental import pallas as pl
from jax.experimental.pallas import tpu as pltpu

_LANE = 128
_SUBLANE = 8
_SUB_ROWS = 512        # inner-loop chunk: 512*128*4 B = 256 KiB per operand
_MAX_BLOCK_ROWS = 4096  # 4096*128*4 B = 2 MiB per input block per buffer


def _round_up(x, m):
    return ((x + m - 1) // m) * m


def _log_mse_kernel(o_ref, t_ref, out_ref, *, eps, block_rows, total_rows,
                    need_mask):
    # Sub-chunk size: whole block if it is small, else 512-row pieces.
    sub = block_rows if block_rows < _SUB_ROWS else _SUB_ROWS
    n_sub = block_rows // sub        # block_rows is a multiple of sub by construction
    block_row0 = pl.program_id(0) * block_rows

    # Hoisted once (JAX does not CSE broadcast_in_dim inside loops).
    row_ids = jax.lax.broadcasted_iota(jnp.int32, (sub, _LANE), 0)

    def chunk_sum(j, acc):
        r0 = pl.multiple_of(j * sub, sub)
        o = o_ref[pl.ds(r0, sub), :].astype(jnp.float32)
        t = t_ref[pl.ds(r0, sub), :].astype(jnp.float32)
        d = jnp.log(jnp.abs(o) + eps) - jnp.log(jnp.abs(t) + eps)
        term = d * d
        if need_mask:
            # Last grid block may overhang the array: rows beyond `total_rows`
            # hold unspecified data.  Select (not multiply) so NaN/Inf there
            # cannot propagate.
            valid = (row_ids + (block_row0 + j * sub)) < total_rows
            term = jnp.where(valid, term, 0.0)
        # Fold sublane-groups with pure VPU adds; keep a lane-dense partial.
        return acc + jnp.sum(term.reshape(-1, _SUBLANE, _LANE), axis=0)

    acc0 = jnp.zeros((_SUBLANE, _LANE), jnp.float32)
    if n_sub == 1:
        acc = chunk_sum(0, acc0)
    else:
        acc = jax.lax.fori_loop(0, n_sub, chunk_sum, acc0, unroll=2)
    out_ref[...] = acc.reshape(1, _SUBLANE, _LANE)


def log_mse_loss(output, target, eps=1e-6):
    """Pallas implementation of log_MSE_loss.forward(output, target)."""
    assert output.shape == target.shape
    n = int(output.size)

    def prep(x):
        x = x.reshape(-1)
        if x.dtype not in (jnp.float32, jnp.bfloat16):
            x = x.astype(jnp.float32)   # f32/bf16 pass through untouched
        return x

    o = prep(output)
    t = prep(target)

    # bf16 packs two rows per sublane -> round block rows to 16 in that case.
    min_itemsize = min(o.dtype.itemsize, t.dtype.itemsize)
    row_align = _SUBLANE if min_itemsize >= 4 else 2 * _SUBLANE

    rows_exact = pl.cdiv(n, _LANE)
    if rows_exact <= _SUB_ROWS:
        # Tiny input: single full-array block (one grid step).
        rows = _round_up(max(rows_exact, 1), row_align)
        block_rows = rows
    elif rows_exact <= 2 * _MAX_BLOCK_ROWS:
        # Mid-size: split ~in half so both v7x TensorCores get work.
        rows = rows_exact
        block_rows = _round_up(pl.cdiv(rows, 2), _SUB_ROWS)
    else:
        rows = rows_exact
        block_rows = _MAX_BLOCK_ROWS
    grid = pl.cdiv(rows, block_rows)
    need_mask = (grid * block_rows != rows)

    padded_n = rows * _LANE
    if padded_n != n:
        # TODO(synk): only triggers when numel % 128 != 0 (or tiny inputs);
        # pays one extra HBM copy of each input.  Padded zeros contribute
        # log(eps) - log(eps) == 0 exactly, so they do not affect the sum.
        o = jnp.pad(o, (0, padded_n - n))
        t = jnp.pad(t, (0, padded_n - n))
    o2 = o.reshape(rows, _LANE)
    t2 = t.reshape(rows, _LANE)

    kernel = functools.partial(
        _log_mse_kernel,
        eps=float(eps),
        block_rows=block_rows,
        total_rows=rows,
        need_mask=need_mask,
    )

    partials = pl.pallas_call(
        kernel,
        out_shape=jax.ShapeDtypeStruct((grid, _SUBLANE, _LANE), jnp.float32),
        grid_spec=pltpu.PrefetchScalarGridSpec(
            num_scalar_prefetch=0,
            grid=(grid,),
            in_specs=[
                pl.BlockSpec((block_rows, _LANE), lambda i: (i, 0)),  # output
                pl.BlockSpec((block_rows, _LANE), lambda i: (i, 0)),  # target
            ],
            out_specs=pl.BlockSpec((1, _SUBLANE, _LANE), lambda i: (i, 0, 0)),
        ),
        compiler_params=pltpu.CompilerParams(
            dimension_semantics=("parallel",),
            vmem_limit_bytes=32 * 1024 * 1024,
        ),
        cost_estimate=pl.CostEstimate(
            flops=8 * padded_n,
            transcendentals=2 * padded_n,
            bytes_accessed=(padded_n * (o2.dtype.itemsize + t2.dtype.itemsize)
                            + grid * _SUBLANE * _LANE * 4),
        ),
    )(o2, t2)

    # Tiny final reduction + mean over the TRUE element count.
    return jnp.sum(partials) / n


def _reference(output, target, eps=1e-6):
    # Pure-JAX mirror of the PyTorch module.
    t = jnp.log(jnp.abs(target).astype(jnp.float32) + eps)
    o = jnp.log(jnp.abs(output).astype(jnp.float32) + eps)
    return jnp.mean((o - t) ** 2)


if __name__ == "__main__":
    key = jax.random.PRNGKey(0)
    eps = 1e-6

    # 1) Module-consistent small shape: numel % 128 == 0, single block, no mask.
    # 2) Ragged row count (rows=625): grid=2 + in-kernel tail masking, no pad.
    # 3) rows=1032: grid=2, inner fori_loop (2 sub-chunks) + masking, no pad.
    # 4) numel % 128 != 0: tiny pad fallback path.
    shapes = [(2, 4, 16, 16), (2, 4, 100, 100), (2, 4, 128, 129), (3, 5, 7, 11)]

    for idx, shp in enumerate(shapes):
        k1, k2, key = jax.random.split(key, 3)
        output = jax.random.normal(k1, shp, dtype=jnp.float32)
        target = jax.random.normal(k2, shp, dtype=jnp.float32)

        got = jax.block_until_ready(log_mse_loss(output, target, eps))
        ref = jax.block_until_ready(_reference(output, target, eps))
        assert jnp.allclose(got, ref, rtol=1e-4, atol=1e-5), (idx, shp, got, ref)

    print("KERNEL_OK")
</pallas_src>

<mosaic_0001>
module attributes {stable_mosaic.version = 11 : i64} {
  func.func @_log_mse_kernel(%arg0: i32, %arg1: memref<16x128xf32, #tpu.memory_space<vmem>>, %arg2: memref<16x128xf32, #tpu.memory_space<vmem>>, %arg3: memref<1x8x128xf32, #tpu.memory_space<vmem>>) attributes {dimension_semantics = [#tpu.dimension_semantics<parallel>], iteration_bounds = array<i64: 1>, scalar_prefetch = 0 : i64, scratch_operands = 0 : i64, tpu.core_type = #tpu.core_type<tc>, window_params = [{transform_indices = @transform_0, window_bounds = array<i64: 16, 128>}, {transform_indices = @transform_1, window_bounds = array<i64: 16, 128>}, {transform_indices = @transform_2, window_bounds = array<i64: 1, 8, 128>}]} {
    %cst = arith.constant 0.000000e+00 : f32
    %0 = vector.broadcast %cst : f32 to vector<8x128xf32>
    %c0_i32 = arith.constant 0 : i32
    %1 = tpu.assume_multiple %c0_i32, 16 : i32
    %2 = arith.index_cast %1 : i32 to index
    %c0 = arith.constant 0 : index
    %3 = vector.load %arg1[%2, %c0] : memref<16x128xf32, #tpu.memory_space<vmem>>, vector<16x128xf32>
    %4 = arith.index_cast %1 : i32 to index
    %c0_0 = arith.constant 0 : index
    %5 = vector.load %arg2[%4, %c0_0] : memref<16x128xf32, #tpu.memory_space<vmem>>, vector<16x128xf32>
    %6 = math.absf %3 : vector<16x128xf32>
    %cst_1 = arith.constant 9.99999997E-7 : f32
    %7 = vector.broadcast %cst_1 : f32 to vector<16x128xf32>
    %8 = arith.addf %6, %7 : vector<16x128xf32>
    %9 = math.log %8 : vector<16x128xf32>
    %10 = math.absf %5 : vector<16x128xf32>
    %cst_2 = arith.constant 9.99999997E-7 : f32
    %11 = vector.broadcast %cst_2 : f32 to vector<16x128xf32>
    %12 = arith.addf %10, %11 : vector<16x128xf32>
    %13 = math.log %12 : vector<16x128xf32>
    %14 = arith.subf %9, %13 : vector<16x128xf32>
    %15 = arith.mulf %14, %14 : vector<16x128xf32>
    %16 = vector.shape_cast %15 : vector<16x128xf32> to vector<2x8x128xf32>
    %cst_3 = arith.constant dense<0.000000e+00> : vector<8x128xf32>
    %17 = vector.multi_reduction <add>, %16, %cst_3 [0] : vector<2x8x128xf32> to vector<8x128xf32>
    %18 = arith.addf %0, %17 : vector<8x128xf32>
    %19 = vector.shape_cast %18 : vector<8x128xf32> to vector<1x8x128xf32>
    %c0_4 = arith.constant 0 : index
    %c0_5 = arith.constant 0 : index
    %c0_6 = arith.constant 0 : index
    %20 = vector.load %arg3[%c0_4, %c0_5, %c0_6] : memref<1x8x128xf32, #tpu.memory_space<vmem>>, vector<1x8x128xf32>
    tpu.vector_store %arg3[%c0_4, %c0_5, %c0_6], %19 {strides = array<i32>} : memref<1x8x128xf32, #tpu.memory_space<vmem>>, vector<1x8x128xf32>,
    return
  }
  func.func @transform_0(%arg0: i32) -> (i32, i32) {
    %c0_i32 = arith.constant 0 : i32
    %c0_i32_0 = arith.constant 0 : i32
    return %arg0, %c0_i32 : i32, i32
  }
  func.func @transform_1(%arg0: i32) -> (i32, i32) {
    %c0_i32 = arith.constant 0 : i32
    %c0_i32_0 = arith.constant 0 : i32
    return %arg0, %c0_i32 : i32, i32
  }
  func.func @transform_2(%arg0: i32) -> (i32, i32, i32) {
    %c0_i32 = arith.constant 0 : i32
    %c0_i32_0 = arith.constant 0 : i32
    %c0_i32_1 = arith.constant 0 : i32
    return %arg0, %c0_i32, %c0_i32_0 : i32, i32, i32
  }
}

</mosaic_0001>

<llo_original>
// kernel: tpu_custom_call.1
$region0: #{tpu_custom_call.1}
  #allocation0 [shape = 'u32[]', space=smem, size = 0x4, offset = 0x4, fixed_abs, tag = 'smem constant byte address 0x4 - core index']
  #allocation1 [shape = 'u32[144,128]{1,0:T(1,128)}', space=vmem, size = 0x12000, scoped, tag = 'internal scratch']
  %s0 = inlined_call_operand.hbm [shape: f32[16,128], index: 0, kind: input, shape index: {}]
  %s1 = inlined_call_operand.hbm [shape: f32[16,128], index: 1, kind: input, shape index: {}]
  %s2 = inlined_call_operand.hbm [shape: f32[1,8,128], index: 2, kind: output, shape index: {}]
  %s3 = sld [smem:[#allocation0]]
  $region26: #{tpu_custom_call.1} parent=0
    _
  %s5 = ssub.s32 1, %s3
  %s6 = scalar_select 0, %s5, %s3
  $region1: #{tpu_custom_call.1} parent=0
    #allocation2 [shape = 'u8[8192]{0}', space=vmem, size = 0x2000, scoped, tag = 'input window, operand 0, single buffered']
    #allocation3 [shape = 's32[1]{0}', space=sflag, size = 0x4, scoped, tag = 'scoped memory for tpu_custom_call.1']
    #allocation4 [shape = 's32[1]{0}', space=sflag, size = 0x4, scoped, tag = 'scoped memory for tpu_custom_call.1']
    #allocation5 [shape = 'u8[8192]{0}', space=vmem, size = 0x2000, scoped, tag = 'input window, operand 1, single buffered']
    #allocation6 [shape = 's32[1]{0}', space=sflag, size = 0x4, scoped, tag = 'scoped memory for tpu_custom_call.1']
    #allocation7 [shape = 'u8[4096]{0}', space=vmem, size = 0x1000, scoped, tag = 'output window, operand 0, single buffered']
    %7 = vsyncpa [#allocation3], 0
    %8 = vsyncpa [#allocation6], 0
    %9 = vsyncpa [#allocation4], 0
    // Predicated region
    $region2: #{tpu_custom_call.1} parent=1 // pred_check
      _
    $region3: #{tpu_custom_call.1} parent=1 // pred_check_branch
      %11 = sbr.rel (0) target = $region5
    $region4: #{tpu_custom_call.1} parent=1 // pred_region
      %s13 = ssub.s32 256, 256
      %14 = vsyncadd [#allocation3], %s13
      %s15 = sshll.u32 [#allocation2], 4
      %s16 = int_to_ptr.vmem [resolvable:$true] %s15
      %21 = dma.hbm_to_vmem [thread:$0]  %s0, 256, %s16, [#allocation3], 128, 128, 8
    $region5: #{tpu_custom_call.1} parent=1 // pred_fallthru
      _
    // Predicated region
    $region6: #{tpu_custom_call.1} parent=1 // pred_check
      _
    $region7: #{tpu_custom_call.1} parent=1 // pred_check_branch
      %23 = sbr.rel (0) target = $region9
    $region8: #{tpu_custom_call.1} parent=1 // pred_region
      %s25 = ssub.s32 256, 256
      %26 = vsyncadd [#allocation6], %s25
      %s27 = sshll.u32 [#allocation5], 4
      %s28 = int_to_ptr.vmem [resolvable:$true] %s27
      %33 = dma.hbm_to_vmem [thread:$0]  %s1, 256, %s28, [#allocation6], 128, 128, 8
    $region9: #{tpu_custom_call.1} parent=1 // pred_fallthru
      _
    // Predicated region
    $region10: #{tpu_custom_call.1} parent=1 // pred_check
      _
    $region11: #{tpu_custom_call.1} parent=1 // pred_check_branch
      %35 = sbr.rel (0) target = $region13
    $region12: #{tpu_custom_call.1} parent=1 // pred_region
      %36 = dma.done [#allocation3], 256
    $region13: #{tpu_custom_call.1} parent=1 // pred_fallthru
      _
    // Predicated region
    $region14: #{tpu_custom_call.1} parent=1 // pred_check
      _
    $region15: #{tpu_custom_call.1} parent=1 // pred_check_branch
      %38 = sbr.rel (0) target = $region17
    $region16: #{tpu_custom_call.1} parent=1 // pred_region
      %39 = dma.done [#allocation6], 256
    $region17: #{tpu_custom_call.1} parent=1 // pred_fallthru
      _
    %v40 = vld [vmem:[#allocation2] sm:$0xff]
    %v41 = vld [vmem:[#allocation2 + $0x8] sm:$0xff]
    %v42 = vld [vmem:[#allocation5] sm:$0xff]
    %v43 = vld [vmem:[#allocation5 + $0x8] sm:$0xff]
    %v44 = vand.u32 2147483647, %v40
    %v45 = vand.u32 2147483647, %v41
    %v46 = vadd.f32 %v44, 1e-06
    %v47 = vadd.f32 %v45, 1e-06
    %v48 = vlog2.pop %v46
    %v49 = vmul.f32 %v48, 0.6931472
    %v50 = vlog2.pop %v47
    %v51 = vmul.f32 %v50, 0.6931472
    %v52 = vand.u32 2147483647, %v42
    %v53 = vand.u32 2147483647, %v43
    %v54 = vadd.f32 %v52, 1e-06
    %v55 = vadd.f32 %v53, 1e-06
    %v56 = vlog2.pop %v54
    %v57 = vmul.f32 %v56, 0.6931472
    %v58 = vlog2.pop %v55
    %v59 = vmul.f32 %v58, 0.6931472
    %v60 = vsub.f32 %v49, %v57
    %v61 = vsub.f32 %v51, %v59
    %v62 = vmul.f32 %v60, %v60
    %v63 = vmul.f32 %v61, %v61
    %v64 = vadd.f32 %v62, %v63
    %v65 = vadd.f32 %v64, 0.0
    %66 = vst [vmem:[#allocation7] sm:$0xff] %v65
    // Predicated region
    $region18: #{tpu_custom_call.1} parent=1 // pred_check
      _
    $region19: #{tpu_custom_call.1} parent=1 // pred_check_branch
      %68 = sbr.rel (0) target = $region21
    $region20: #{tpu_custom_call.1} parent=1 // pred_region
      %s70 = ssub.s32 128, 128
      %71 = vsyncadd [#allocation4], %s70
      %s73 = sshll.u32 [#allocation7], 4
      %s74 = int_to_ptr.vmem [resolvable:$true] %s73
      %76 = dma.vmem_to_hbm [thread:$0]  %s74, 128, %s2, [#allocation4]
    $region21: #{tpu_custom_call.1} parent=1 // pred_fallthru
      _
    // Predicated region
    $region22: #{tpu_custom_call.1} parent=1 // pred_check
      _
    $region23: #{tpu_custom_call.1} parent=1 // pred_check_branch
      %78 = sbr.rel (0) target = $region25
    $region24: #{tpu_custom_call.1} parent=1 // pred_region
      %79 = dma.done [#allocation4], 128
    $region25: #{tpu_custom_call.1} parent=1 // pred_fallthru
      _
    %80 = vsyncpa [#allocation3], 1
    %81 = vsyncpa [#allocation6], 1
    %82 = vsyncpa [#allocation4], 1

</llo_original>
